<compile_context>
chip_gen: v7x
topology: tpu7x:2x2x1
jax: 0.10.0
libtpu: 0.0.40
codegen_flags: <defaults>
</compile_context>

<pallas_src>
import jax
import jax.numpy as jnp
from jax.experimental import pallas as pl
from jax.experimental.pallas import tpu as pltpu


def _round_up(x, m):
    return ((x + m - 1) // m) * m


def _make_abmil_kernel(n_valid):
    """Kernel factory; n_valid = true instance count (N), closure-captured."""

    def kernel(x_ref, w1_ref, b1_ref, wa_ref, wc_ref, attn_ref, logit_ref):
        TB, n_pad, D = x_ref.shape
        Hp = w1_ref.shape[1]

        # --- Instance encoder: one (TB*N, D) @ (D, Hp) MXU matmul, bf16 in / f32 acc.
        # N_pad is a multiple of 8, so this reshape is a free view (no VMEM copy).
        x2 = x_ref[...].reshape(TB * n_pad, D)
        e2 = jnp.dot(x2, w1_ref[...], preferred_element_type=jnp.float32)   # (TB*N, Hp)
        e2 = jnp.maximum(e2 + b1_ref[...], 0.0)                             # relu(fc1)

        # --- Attention score + classifier projection fused per instance (linearity):
        #   s_n = e_n . wa ,   c_n = e_n . wc   (width-1 projections -> VPU mul + reduce).
        # Only these tiny score tensors are relaid out to the lane-dense (TB, N) shape.
        s = jnp.sum(e2 * wa_ref[...], axis=-1, keepdims=True).reshape(TB, n_pad)
        c = jnp.sum(e2 * wc_ref[...], axis=-1, keepdims=True).reshape(TB, n_pad)

        # Mask padded instances so they get exactly zero attention weight.
        if n_pad != n_valid:
            col = jax.lax.broadcasted_iota(jnp.int32, (TB, n_pad), 1)
            s = jnp.where(col < n_valid, s, jnp.float32(-1e30))

        # --- Softmax over instances on an N-on-lanes layout (EUP exp, XLU reduce,
        # full-width vregs).  ba is omitted: softmax is shift-invariant to a scalar.
        m = jnp.max(s, axis=-1, keepdims=True)                               # (TB, 1)
        p = jnp.exp(s - m)                                                   # (TB, N)
        denom = jnp.sum(p, axis=-1, keepdims=True)                           # (TB, 1)
        a = p / denom                           # exact divide: attn rows sum to 1
        attn_ref[...] = a.astype(attn_ref.dtype)                             # lane-dense store

        # --- logit = sum_n a_n * (e_n . wc)  ==  (sum_n a_n * e_n) . wc  (exact).
        logit = jnp.sum(a * c, axis=-1, keepdims=True)                       # (TB, 1)
        logit_ref[...] = logit.astype(logit_ref.dtype)

    return kernel


def abmil_forward(bags, params, *, compute_dtype=jnp.bfloat16, block_bags=None):
    """bags: (B, N, D) float32. Returns (prob (B,1), y_hat (B,1), attn (B,N,1))."""
    B, N, D = bags.shape
    w1, b1, wa, ba, wc, bc = params
    H = w1.shape[1]
    del ba  # scalar attention bias: softmax over instances is shift-invariant (exact)

    # Pad the hidden dim to a full 128-lane multiple (exact: padded columns are 0).
    Hp = _round_up(H, 128)
    w1p = jnp.zeros((D, Hp), jnp.float32).at[:, :H].set(w1).astype(compute_dtype)
    b1p = jnp.zeros((1, Hp), jnp.float32).at[:, :H].set(b1.reshape(1, H))
    wap = jnp.zeros((1, Hp), jnp.float32).at[:, :H].set(wa.reshape(1, H))
    wcp = jnp.zeros((1, Hp), jnp.float32).at[:, :H].set(wc.reshape(1, H))

    # Pad the instance axis to a multiple of 8 so the in-kernel reshape is free.
    # Padded instances are masked to a huge negative score in the kernel.
    N_pad = _round_up(N, 8)

    # --- VMEM budget & bag-block (TB) sizing from the true live footprint. -------
    cbytes = jnp.dtype(compute_dtype).itemsize
    try:
        vmem_cap = int(pltpu.get_tpu_info().vmem_capacity_bytes)
    except Exception:
        vmem_cap = 64 << 20                        # conservative (v7x-sized) fallback
    vmem_limit = int(min(vmem_cap // 2, 64 << 20))  # 64 MiB on v5e/v6e, 32 MiB on v7x

    per_bag = (2 * N_pad * D * cbytes              # double-buffered bags block
               + N_pad * Hp * 4                    # f32 instance encodings (e2)
               + 2 * N_pad * 4                     # attn output (double-buffered)
               + 4 * N_pad * 4)                    # scores / softmax working set
    fixed = D * Hp * cbytes + 4 * Hp * 4 + (1 << 20)   # weights + bias rows + slack
    if block_bags is None:
        budget = max(int(0.6 * vmem_limit) - fixed, per_bag)
        block_bags = max(8, min(512, budget // max(per_bag, 1)))
    TB = _round_up(min(block_bags, max(B, 1)), 8)      # sublane-aligned bag block
    # Keep >= 2 grid steps when the batch allows it so both v7x TCs get work.
    TB = min(TB, _round_up(pl.cdiv(_round_up(B, 8), 2), 8))
    TB = max(TB, 8)
    B_pad = _round_up(B, TB)

    bags_p = bags
    if B_pad != B or N_pad != N:
        bags_p = jnp.pad(bags, ((0, B_pad - B), (0, N_pad - N), (0, 0)))
    bags_p = bags_p.astype(compute_dtype)

    kernel = _make_abmil_kernel(N)
    grid = (B_pad // TB,)

    def _run(single_buffer_weights):
        if single_buffer_weights:
            def const_spec(shape):
                return pl.BlockSpec(shape, lambda b: (0,) * len(shape),
                                    pipeline_mode=pl.Buffered(1))
        else:
            def const_spec(shape):
                return pl.BlockSpec(shape, lambda b: (0,) * len(shape))
        return pl.pallas_call(
            kernel,
            out_shape=[
                jax.ShapeDtypeStruct((B_pad, N_pad), jnp.float32),   # attention weights
                jax.ShapeDtypeStruct((B_pad, 1), jnp.float32),       # pre-bias logits
            ],
            grid_spec=pltpu.PrefetchScalarGridSpec(
                num_scalar_prefetch=0,
                grid=grid,
                in_specs=[
                    pl.BlockSpec((TB, N_pad, D), lambda b: (b, 0, 0)),   # bags block
                    const_spec((D, Hp)),                                  # W1 (bf16)
                    const_spec((1, Hp)),                                  # b1
                    const_spec((1, Hp)),                                  # Wa row
                    const_spec((1, Hp)),                                  # Wc row
                ],
                out_specs=[
                    pl.BlockSpec((TB, N_pad), lambda b: (b, 0)),          # lane-dense attn
                    pl.BlockSpec((TB, 1), lambda b: (b, 0)),              # logits
                ],
            ),
            compiler_params=pltpu.CompilerParams(
                dimension_semantics=("parallel",),
                vmem_limit_bytes=vmem_limit),
        )(bags_p, w1p, b1p, wap, wcp)

    try:
        attn2d, logit = _run(True)
    except Exception:
        # TODO(synk): pl.Buffered(1) (single-buffered constant weights) not accepted
        # by this JAX build; fall back to default double-buffered weight specs.
        attn2d, logit = _run(False)

    out = logit[:B] + bc.reshape(1, 1).astype(jnp.float32)   # classifier bias (exact)
    prob = jax.nn.sigmoid(out)
    # Matches torch.ge(output, 0.5) on the pre-sigmoid classifier output.
    y_hat = (out >= 0.5).astype(jnp.float32)
    attn = attn2d[:B, :N][..., None]                          # back to (B, N, 1)
    return prob, y_hat, attn


def abmil_reference(bags, params):
    """Pure-JAX f32 reference mirroring the PyTorch forward (multibatch=None, mask=None)."""
    w1, b1, wa, ba, wc, bc = params
    e = jax.nn.relu(bags @ w1 + b1)                   # (B, N, H)
    raw = e @ wa + ba                                 # (B, N, 1)
    a = jax.nn.softmax(raw, axis=1)                   # (B, N, 1)
    rep = jnp.sum(a * e, axis=1)                      # (B, H)
    out = rep @ wc + bc                               # (B, 1)
    return jax.nn.sigmoid(out), (out >= 0.5).astype(jnp.float32), a


def init_params(key, input_dim, hidden_dim):
    k1, k2, k3, k4, k5, k6 = jax.random.split(key, 6)
    s1 = 1.0 / jnp.sqrt(input_dim)
    s2 = 1.0 / jnp.sqrt(hidden_dim)
    w1 = jax.random.uniform(k1, (input_dim, hidden_dim), jnp.float32, -s1, s1)
    b1 = jax.random.uniform(k2, (hidden_dim,), jnp.float32, -s1, s1)
    wa = jax.random.uniform(k3, (hidden_dim, 1), jnp.float32, -s2, s2)
    ba = jax.random.uniform(k4, (1,), jnp.float32, -s2, s2)
    wc = jax.random.uniform(k5, (hidden_dim, 1), jnp.float32, -s2, s2)
    bc = jax.random.uniform(k6, (1,), jnp.float32, -s2, s2)
    return (w1, b1, wa, ba, wc, bc)


if __name__ == "__main__":
    # Small demo shapes: 8 bags, 12 instances (non-multiple of 8 to exercise the
    # instance-padding/masking path), 32-d features, 16-d hidden.
    B, N, D, H = 8, 12, 32, 16

    key = jax.random.PRNGKey(0)
    kx, kp = jax.random.split(key)
    bags = jax.random.normal(kx, (B, N, D), dtype=jnp.float32)
    params = init_params(kp, D, H)

    prob, y_hat, attn = jax.block_until_ready(abmil_forward(bags, params))
    prob_ref, yhat_ref, attn_ref = abmil_reference(bags, params)

    assert prob.shape == (B, 1) and y_hat.shape == (B, 1) and attn.shape == (B, N, 1)
    # bf16 MXU inputs with f32 accumulation -> loose-ish tolerance vs. the f32 reference.
    assert jnp.allclose(prob, prob_ref, atol=2e-2, rtol=2e-2), float(jnp.max(jnp.abs(prob - prob_ref)))
    assert jnp.allclose(attn, attn_ref, atol=2e-2, rtol=2e-2), float(jnp.max(jnp.abs(attn - attn_ref)))
    # Exact softmax divide in-kernel: attention weights sum to 1 per bag.
    assert jnp.allclose(jnp.sum(attn, axis=1), 1.0, atol=1e-5)
    # Compare y_hat only away from the 0.5 logit threshold (bf16 rounding could
    # legitimately flip a logit sitting exactly on the decision boundary).
    safe = jnp.abs(prob_ref - jax.nn.sigmoid(jnp.float32(0.5))) > 1e-2
    assert bool(jnp.all(jnp.where(safe, y_hat == yhat_ref, True)))

    print("KERNEL_OK")
</pallas_src>

<mosaic_0001>
module attributes {stable_mosaic.version = 11 : i64} {
  func.func @kernel(%arg0: i32, %arg1: memref<8x16x32xbf16, #tpu.memory_space<vmem>>, %arg2: memref<32x128xbf16, #tpu.memory_space<vmem>>, %arg3: memref<1x128xf32, #tpu.memory_space<vmem>>, %arg4: memref<1x128xf32, #tpu.memory_space<vmem>>, %arg5: memref<1x128xf32, #tpu.memory_space<vmem>>, %arg6: memref<8x16xf32, #tpu.memory_space<vmem>>, %arg7: memref<8x1xf32, #tpu.memory_space<vmem>>) attributes {dimension_semantics = [#tpu.dimension_semantics<parallel>], iteration_bounds = array<i64: 1>, scalar_prefetch = 0 : i64, scratch_operands = 0 : i64, tpu.core_type = #tpu.core_type<tc>, window_params = [{transform_indices = @transform_0, window_bounds = array<i64: 8, 16, 32>}, {pipeline_mode = #tpu.pipeline_mode<synchronous>, transform_indices = @transform_1, window_bounds = array<i64: 32, 128>}, {pipeline_mode = #tpu.pipeline_mode<synchronous>, transform_indices = @transform_2, window_bounds = array<i64: 1, 128>}, {pipeline_mode = #tpu.pipeline_mode<synchronous>, transform_indices = @transform_3, window_bounds = array<i64: 1, 128>}, {pipeline_mode = #tpu.pipeline_mode<synchronous>, transform_indices = @transform_4, window_bounds = array<i64: 1, 128>}, {transform_indices = @transform_5, window_bounds = array<i64: 8, 16>}, {transform_indices = @transform_6, window_bounds = array<i64: 8, 1>}]} {
    %c0 = arith.constant 0 : index
    %c0_0 = arith.constant 0 : index
    %c0_1 = arith.constant 0 : index
    %0 = vector.load %arg1[%c0, %c0_0, %c0_1] : memref<8x16x32xbf16, #tpu.memory_space<vmem>>, vector<8x16x32xbf16>
    %1 = vector.shape_cast %0 : vector<8x16x32xbf16> to vector<128x32xbf16>
    %c0_2 = arith.constant 0 : index
    %c0_3 = arith.constant 0 : index
    %2 = vector.load %arg2[%c0_2, %c0_3] : memref<32x128xbf16, #tpu.memory_space<vmem>>, vector<32x128xbf16>
    %cst = arith.constant dense<0.000000e+00> : vector<128x128xf32>
    %3 = tpu.matmul %1, %2, %cst {dimension_numbers = #tpu.dot_dimension_numbers<[1], [0], [0], [1], [0, 0, 1, 1], [], []>} : vector<128x32xbf16>, vector<32x128xbf16>, vector<128x128xf32> -> vector<128x128xf32>
    %c0_4 = arith.constant 0 : index
    %c0_5 = arith.constant 0 : index
    %4 = vector.load %arg3[%c0_4, %c0_5] : memref<1x128xf32, #tpu.memory_space<vmem>>, vector<1x128xf32>
    %5 = vector.broadcast %4 : vector<1x128xf32> to vector<128x128xf32>
    %6 = arith.addf %3, %5 : vector<128x128xf32>
    %cst_6 = arith.constant 0.000000e+00 : f32
    %7 = vector.broadcast %cst_6 : f32 to vector<128x128xf32>
    %8 = arith.maximumf %6, %7 : vector<128x128xf32>
    %c0_7 = arith.constant 0 : index
    %c0_8 = arith.constant 0 : index
    %9 = vector.load %arg4[%c0_7, %c0_8] : memref<1x128xf32, #tpu.memory_space<vmem>>, vector<1x128xf32>
    %10 = vector.broadcast %9 : vector<1x128xf32> to vector<128x128xf32>
    %11 = arith.mulf %8, %10 : vector<128x128xf32>
    %cst_9 = arith.constant dense<0.000000e+00> : vector<128xf32>
    %12 = vector.multi_reduction <add>, %11, %cst_9 [1] : vector<128x128xf32> to vector<128xf32>
    %13 = vector.shape_cast %12 : vector<128xf32> to vector<128x1xf32>
    %14 = vector.shape_cast %13 : vector<128x1xf32> to vector<8x16xf32>
    %c0_10 = arith.constant 0 : index
    %c0_11 = arith.constant 0 : index
    %15 = vector.load %arg5[%c0_10, %c0_11] : memref<1x128xf32, #tpu.memory_space<vmem>>, vector<1x128xf32>
    %16 = vector.broadcast %15 : vector<1x128xf32> to vector<128x128xf32>
    %17 = arith.mulf %8, %16 : vector<128x128xf32>
    %cst_12 = arith.constant dense<0.000000e+00> : vector<128xf32>
    %18 = vector.multi_reduction <add>, %17, %cst_12 [1] : vector<128x128xf32> to vector<128xf32>
    %19 = vector.shape_cast %18 : vector<128xf32> to vector<128x1xf32>
    %20 = vector.shape_cast %19 : vector<128x1xf32> to vector<8x16xf32>
    %21 = tpu.iota {dimensions = array<i32: 1>} : vector<8x16xi32>
    %c12_i32 = arith.constant 12 : i32
    %22 = vector.broadcast %c12_i32 : i32 to vector<8x16xi32>
    %23 = arith.cmpi slt, %21, %22 : vector<8x16xi32>
    %cst_13 = arith.constant -1.000000e+30 : f32
    %24 = vector.broadcast %cst_13 : f32 to vector<8x16xf32>
    %25 = arith.select %23, %14, %24 : vector<8x16xi1>, vector<8x16xf32>
    %cst_14 = arith.constant dense<0xFF800000> : vector<8xf32>
    %26 = vector.multi_reduction <maximumf>, %25, %cst_14 [1] : vector<8x16xf32> to vector<8xf32>
    %27 = vector.shape_cast %26 : vector<8xf32> to vector<8x1xf32>
    %28 = vector.broadcast %27 : vector<8x1xf32> to vector<8x16xf32>
    %29 = arith.subf %25, %28 : vector<8x16xf32>
    %30 = math.exp %29 : vector<8x16xf32>
    %cst_15 = arith.constant dense<0.000000e+00> : vector<8xf32>
    %31 = vector.multi_reduction <add>, %30, %cst_15 [1] : vector<8x16xf32> to vector<8xf32>
    %32 = vector.shape_cast %31 : vector<8xf32> to vector<8x1xf32>
    %33 = vector.broadcast %32 : vector<8x1xf32> to vector<8x16xf32>
    %34 = arith.divf %30, %33 : vector<8x16xf32>
    %c0_16 = arith.constant 0 : index
    %c0_17 = arith.constant 0 : index
    %35 = vector.load %arg6[%c0_16, %c0_17] : memref<8x16xf32, #tpu.memory_space<vmem>>, vector<8x16xf32>
    tpu.vector_store %arg6[%c0_16, %c0_17], %34 {strides = array<i32>} : memref<8x16xf32, #tpu.memory_space<vmem>>, vector<8x16xf32>,
    %36 = arith.mulf %34, %20 : vector<8x16xf32>
    %cst_18 = arith.constant dense<0.000000e+00> : vector<8xf32>
    %37 = vector.multi_reduction <add>, %36, %cst_18 [1] : vector<8x16xf32> to vector<8xf32>
    %38 = vector.shape_cast %37 : vector<8xf32> to vector<8x1xf32>
    %c0_19 = arith.constant 0 : index
    %c0_20 = arith.constant 0 : index
    %39 = vector.load %arg7[%c0_19, %c0_20] : memref<8x1xf32, #tpu.memory_space<vmem>>, vector<8x1xf32>
    tpu.vector_store %arg7[%c0_19, %c0_20], %38 {strides = array<i32>} : memref<8x1xf32, #tpu.memory_space<vmem>>, vector<8x1xf32>,
    return
  }
  func.func @transform_0(%arg0: i32) -> (i32, i32, i32) {
    %c0_i32 = arith.constant 0 : i32
    %c0_i32_0 = arith.constant 0 : i32
    %c0_i32_1 = arith.constant 0 : i32
    return %arg0, %c0_i32, %c0_i32_0 : i32, i32, i32
  }
  func.func @transform_1(%arg0: i32) -> (i32, i32) {
    %c0_i32 = arith.constant 0 : i32
    %c0_i32_0 = arith.constant 0 : i32
    %c0_i32_1 = arith.constant 0 : i32
    return %c0_i32, %c0_i32_0 : i32, i32
  }
  func.func @transform_2(%arg0: i32) -> (i32, i32) {
    %c0_i32 = arith.constant 0 : i32
    %c0_i32_0 = arith.constant 0 : i32
    %c0_i32_1 = arith.constant 0 : i32
    return %c0_i32, %c0_i32_0 : i32, i32
  }
  func.func @transform_3(%arg0: i32) -> (i32, i32) {
    %c0_i32 = arith.constant 0 : i32
    %c0_i32_0 = arith.constant 0 : i32
    %c0_i32_1 = arith.constant 0 : i32
    return %c0_i32, %c0_i32_0 : i32, i32
  }
  func.func @transform_4(%arg0: i32) -> (i32, i32) {
    %c0_i32 = arith.constant 0 : i32
    %c0_i32_0 = arith.constant 0 : i32
    %c0_i32_1 = arith.constant 0 : i32
    return %c0_i32, %c0_i32_0 : i32, i32
  }
  func.func @transform_5(%arg0: i32) -> (i32, i32) {
    %c0_i32 = arith.constant 0 : i32
    %c0_i32_0 = arith.constant 0 : i32
    return %arg0, %c0_i32 : i32, i32
  }
  func.func @transform_6(%arg0: i32) -> (i32, i32) {
    %c0_i32 = arith.constant 0 : i32
    %c0_i32_0 = arith.constant 0 : i32
    return %arg0, %c0_i32 : i32, i32
  }
}

module attributes {stable_mosaic.version = 11 : i64} {
  func.func @kernel(%arg0: i32, %arg1: memref<8x16x32xbf16, #tpu.memory_space<vmem>>, %arg2: memref<32x128xbf16, #tpu.memory_space<vmem>>, %arg3: memref<1x128xf32, #tpu.memory_space<vmem>>, %arg4: memref<1x128xf32, #tpu.memory_space<vmem>>, %arg5: memref<1x128xf32, #tpu.memory_space<vmem>>, %arg6: memref<8x16xf32, #tpu.memory_space<vmem>>, %arg7: memref<8x1xf32, #tpu.memory_space<vmem>>) attributes {dimension_semantics = [#tpu.dimension_semantics<parallel>], iteration_bounds = array<i64: 1>, scalar_prefetch = 0 : i64, scratch_operands = 0 : i64, tpu.core_type = #tpu.core_type<tc>, window_params = [{transform_indices = @transform_0, window_bounds = array<i64: 8, 16, 32>}, {pipeline_mode = #tpu.pipeline_mode<synchronous>, transform_indices = @transform_1, window_bounds = array<i64: 32, 128>}, {pipeline_mode = #tpu.pipeline_mode<synchronous>, transform_indices = @transform_2, window_bounds = array<i64: 1, 128>}, {pipeline_mode = #tpu.pipeline_mode<synchronous>, transform_indices = @transform_3, window_bounds = array<i64: 1, 128>}, {pipeline_mode = #tpu.pipeline_mode<synchronous>, transform_indices = @transform_4, window_bounds = array<i64: 1, 128>}, {transform_indices = @transform_5, window_bounds = array<i64: 8, 16>}, {transform_indices = @transform_6, window_bounds = array<i64: 8, 1>}]} {
    %c0 = arith.constant 0 : index
    %c0_0 = arith.constant 0 : index
    %c0_1 = arith.constant 0 : index
    %0 = vector.load %arg1[%c0, %c0_0, %c0_1] : memref<8x16x32xbf16, #tpu.memory_space<vmem>>, vector<8x16x32xbf16>
    %1 = vector.shape_cast %0 : vector<8x16x32xbf16> to vector<128x32xbf16>
    %c0_2 = arith.constant 0 : index
    %c0_3 = arith.constant 0 : index
    %2 = vector.load %arg2[%c0_2, %c0_3] : memref<32x128xbf16, #tpu.memory_space<vmem>>, vector<32x128xbf16>
    %cst = arith.constant dense<0.000000e+00> : vector<128x128xf32>
    %3 = tpu.matmul %1, %2, %cst {dimension_numbers = #tpu.dot_dimension_numbers<[1], [0], [0], [1], [0, 0, 1, 1], [], []>} : vector<128x32xbf16>, vector<32x128xbf16>, vector<128x128xf32> -> vector<128x128xf32>
    %c0_4 = arith.constant 0 : index
    %c0_5 = arith.constant 0 : index
    %4 = vector.load %arg3[%c0_4, %c0_5] : memref<1x128xf32, #tpu.memory_space<vmem>>, vector<1x128xf32>
    %5 = vector.broadcast %4 : vector<1x128xf32> to vector<128x128xf32>
    %6 = arith.addf %3, %5 : vector<128x128xf32>
    %cst_6 = arith.constant 0.000000e+00 : f32
    %7 = vector.broadcast %cst_6 : f32 to vector<128x128xf32>
    %8 = arith.maximumf %6, %7 : vector<128x128xf32>
    %c0_7 = arith.constant 0 : index
    %c0_8 = arith.constant 0 : index
    %9 = vector.load %arg4[%c0_7, %c0_8] : memref<1x128xf32, #tpu.memory_space<vmem>>, vector<1x128xf32>
    %10 = vector.broadcast %9 : vector<1x128xf32> to vector<128x128xf32>
    %11 = arith.mulf %8, %10 : vector<128x128xf32>
    %cst_9 = arith.constant dense<0.000000e+00> : vector<128xf32>
    %12 = vector.multi_reduction <add>, %11, %cst_9 [1] : vector<128x128xf32> to vector<128xf32>
    %13 = vector.shape_cast %12 : vector<128xf32> to vector<128x1xf32>
    %14 = vector.shape_cast %13 : vector<128x1xf32> to vector<8x16xf32>
    %c0_10 = arith.constant 0 : index
    %c0_11 = arith.constant 0 : index
    %15 = vector.load %arg5[%c0_10, %c0_11] : memref<1x128xf32, #tpu.memory_space<vmem>>, vector<1x128xf32>
    %16 = vector.broadcast %15 : vector<1x128xf32> to vector<128x128xf32>
    %17 = arith.mulf %8, %16 : vector<128x128xf32>
    %cst_12 = arith.constant dense<0.000000e+00> : vector<128xf32>
    %18 = vector.multi_reduction <add>, %17, %cst_12 [1] : vector<128x128xf32> to vector<128xf32>
    %19 = vector.shape_cast %18 : vector<128xf32> to vector<128x1xf32>
    %20 = vector.shape_cast %19 : vector<128x1xf32> to vector<8x16xf32>
    %21 = tpu.iota {dimensions = array<i32: 1>} : vector<8x16xi32>
    %c12_i32 = arith.constant 12 : i32
    %22 = vector.broadcast %c12_i32 : i32 to vector<8x16xi32>
    %23 = arith.cmpi slt, %21, %22 : vector<8x16xi32>
    %cst_13 = arith.constant -1.000000e+30 : f32
    %24 = vector.broadcast %cst_13 : f32 to vector<8x16xf32>
    %25 = arith.select %23, %14, %24 : vector<8x16xi1>, vector<8x16xf32>
    %cst_14 = arith.constant dense<0xFF800000> : vector<8xf32>
    %26 = vector.multi_reduction <maximumf>, %25, %cst_14 [1] : vector<8x16xf32> to vector<8xf32>
    %27 = vector.shape_cast %26 : vector<8xf32> to vector<8x1xf32>
    %28 = vector.broadcast %27 : vector<8x1xf32> to vector<8x16xf32>
    %29 = arith.subf %25, %28 : vector<8x16xf32>
    %30 = math.exp %29 : vector<8x16xf32>
    %cst_15 = arith.constant dense<0.000000e+00> : vector<8xf32>
    %31 = vector.multi_reduction <add>, %30, %cst_15 [1] : vector<8x16xf32> to vector<8xf32>
    %32 = vector.shape_cast %31 : vector<8xf32> to vector<8x1xf32>
    %33 = vector.broadcast %32 : vector<8x1xf32> to vector<8x16xf32>
    %34 = arith.divf %30, %33 : vector<8x16xf32>
    %c0_16 = arith.constant 0 : index
    %c0_17 = arith.constant 0 : index
    %35 = vector.load %arg6[%c0_16, %c0_17] : memref<8x16xf32, #tpu.memory_space<vmem>>, vector<8x16xf32>
    tpu.vector_store %arg6[%c0_16, %c0_17], %34 {strides = array<i32>} : memref<8x16xf32, #tpu.memory_space<vmem>>, vector<8x16xf32>,
    %36 = arith.mulf %34, %20 : vector<8x16xf32>
    %cst_18 = arith.constant dense<0.000000e+00> : vector<8xf32>
    %37 = vector.multi_reduction <add>, %36, %cst_18 [1] : vector<8x16xf32> to vector<8xf32>
    %38 = vector.shape_cast %37 : vector<8xf32> to vector<8x1xf32>
    %c0_19 = arith.constant 0 : index
    %c0_20 = arith.constant 0 : index
    %39 = vector.load %arg7[%c0_19, %c0_20] : memref<8x1xf32, #tpu.memory_space<vmem>>, vector<8x1xf32>
    tpu.vector_store %arg7[%c0_19, %c0_20], %38 {strides = array<i32>} : memref<8x1xf32, #tpu.memory_space<vmem>>, vector<8x1xf32>,
    return
  }
  func.func @transform_0(%arg0: i32) -> (i32, i32, i32) {
    %c0_i32 = arith.constant 0 : i32
    %c0_i32_0 = arith.constant 0 : i32
    %c0_i32_1 = arith.constant 0 : i32
    return %arg0, %c0_i32, %c0_i32_0 : i32, i32, i32
  }
  func.func @transform_1(%arg0: i32) -> (i32, i32) {
    %c0_i32 = arith.constant 0 : i32
    %c0_i32_0 = arith.constant 0 : i32
    %c0_i32_1 = arith.constant 0 : i32
    return %c0_i32, %c0_i32_0 : i32, i32
  }
  func.func @transform_2(%arg0: i32) -> (i32, i32) {
    %c0_i32 = arith.constant 0 : i32
    %c0_i32_0 = arith.constant 0 : i32
    %c0_i32_1 = arith.constant 0 : i32
    return %c0_i32, %c0_i32_0 : i32, i32
  }
  func.func @transform_3(%arg0: i32) -> (i32, i32) {
    %c0_i32 = arith.constant 0 : i32
    %c0_i32_0 = arith.constant 0 : i32
    %c0_i32_1 = arith.constant 0 : i32
    return %c0_i32, %c0_i32_0 : i32, i32
  }
  func.func @transform_4(%arg0: i32) -> (i32, i32) {
    %c0_i32 = arith.constant 0 : i32
    %c0_i32_0 = arith.constant 0 : i32
    %c0_i32_1 = arith.constant 0 : i32
    return %c0_i32, %c0_i32_0 : i32, i32
  }
  func.func @transform_5(%arg0: i32) -> (i32, i32) {
    %c0_i32 = arith.constant 0 : i32
    %c0_i32_0 = arith.constant 0 : i32
    return %arg0, %c0_i32 : i32, i32
  }
  func.func @transform_6(%arg0: i32) -> (i32, i32) {
    %c0_i32 = arith.constant 0 : i32
    %c0_i32_0 = arith.constant 0 : i32
    return %arg0, %c0_i32 : i32, i32
  }
}

</mosaic_0001>

<llo_original>
// kernel: tpu_custom_call.1
$region0: #{tpu_custom_call.1}
  #allocation0 [shape = 'u32[]', space=smem, size = 0x4, offset = 0x4, fixed_abs, tag = 'smem constant byte address 0x4 - core index']
  #allocation1 [shape = 'u32[144,128]{1,0:T(1,128)}', space=vmem, size = 0x12000, scoped, tag = 'internal scratch']
  %s0 = inlined_call_operand.hbm [shape: bf16[8,16,32], index: 0, kind: input, shape index: {}]
  %s1 = inlined_call_operand.hbm [shape: bf16[32,128], index: 1, kind: input, shape index: {}]
  %s2 = inlined_call_operand.vmem [shape: f32[1,128], index: 2, kind: input, shape index: {}]
  %s3 = inlined_call_operand.vmem [shape: f32[1,128], index: 3, kind: input, shape index: {}]
  %s4 = inlined_call_operand.vmem [shape: f32[1,128], index: 4, kind: input, shape index: {}]
  %s5 = inlined_call_operand.hbm [shape: f32[8,16], index: 5, kind: output, shape index: {0}]
  %s6 = inlined_call_operand.vmem [shape: f32[8,1], index: 6, kind: output, shape index: {1}]
  %7 = xla_tuple %s5, %s6
  %s8 = sld [smem:[#allocation0]]
  $region46: #{tpu_custom_call.1} parent=0
    _
  %s10 = ssub.s32 1, %s8
  %s11 = scalar_select 0, %s10, %s8
  $region1: #{tpu_custom_call.1} parent=0
    #allocation2 [shape = 'u8[32768]{0}', space=vmem, size = 0x8000, scoped, tag = 'input window, operand 0, single buffered']
    #allocation3 [shape = 's32[1]{0}', space=sflag, size = 0x4, scoped, tag = 'scoped memory for tpu_custom_call.1']
    #allocation4 [shape = 's32[1]{0}', space=sflag, size = 0x4, scoped, tag = 'scoped memory for tpu_custom_call.1']
    #allocation5 [shape = 'u8[8192]{0}', space=vmem, size = 0x2000, scoped, tag = 'input window, operand 1, single buffered']
    #allocation6 [shape = 's32[1]{0}', space=sflag, size = 0x4, scoped, tag = 'scoped memory for tpu_custom_call.1']
    #allocation7 [shape = 'u8[4096]{0}', space=vmem, size = 0x1000, scoped, tag = 'output window, operand 0, single buffered']
    %12 = vsyncpa [#allocation3], 0
    %13 = vsyncpa [#allocation6], 0
    %14 = vsyncpa [#allocation4], 0
    // Predicated region
    $region2: #{tpu_custom_call.1} parent=1 // pred_check
      _
    $region3: #{tpu_custom_call.1} parent=1 // pred_check_branch
      %16 = sbr.rel (0) target = $region5
    $region4: #{tpu_custom_call.1} parent=1 // pred_region
      %s18 = ssub.s32 1024, 1024
      %19 = vsyncadd [#allocation3], %s18
      %s20 = sshll.u32 [#allocation2], 4
      %s21 = int_to_ptr.vmem [resolvable:$true] %s20
      %26 = dma.hbm_to_vmem [thread:$0]  %s0, 1024, %s21, [#allocation3], 64, 64, 4
    $region5: #{tpu_custom_call.1} parent=1 // pred_fallthru
      _
    // Predicated region
    $region6: #{tpu_custom_call.1} parent=1 // pred_check
      _
    $region7: #{tpu_custom_call.1} parent=1 // pred_check_branch
      %28 = sbr.rel (0) target = $region9
    $region8: #{tpu_custom_call.1} parent=1 // pred_region
      %s30 = ssub.s32 256, 256
      %31 = vsyncadd [#allocation6], %s30
      %s32 = sshll.u32 [#allocation5], 4
      %s33 = int_to_ptr.vmem [resolvable:$true] %s32
      %38 = dma.hbm_to_vmem [thread:$0]  %s1, 256, %s33, [#allocation6], 64, 64, 4
    $region9: #{tpu_custom_call.1} parent=1 // pred_fallthru
      _
    // Predicated region
    $region10: #{tpu_custom_call.1} parent=1 // pred_check
      _
    $region11: #{tpu_custom_call.1} parent=1 // pred_check_branch
      %40 = sbr.rel (0) target = $region13
    $region12: #{tpu_custom_call.1} parent=1 // pred_region
      _
    $region13: #{tpu_custom_call.1} parent=1 // pred_fallthru
      _
    // Predicated region
    $region14: #{tpu_custom_call.1} parent=1 // pred_check
      _
    $region15: #{tpu_custom_call.1} parent=1 // pred_check_branch
      %42 = sbr.rel (0) target = $region17
    $region16: #{tpu_custom_call.1} parent=1 // pred_region
      _
    $region17: #{tpu_custom_call.1} parent=1 // pred_fallthru
      _
    // Predicated region
    $region18: #{tpu_custom_call.1} parent=1 // pred_check
      _
    $region19: #{tpu_custom_call.1} parent=1 // pred_check_branch
      %44 = sbr.rel (0) target = $region21
    $region20: #{tpu_custom_call.1} parent=1 // pred_region
      _
    $region21: #{tpu_custom_call.1} parent=1 // pred_fallthru
      _
    // Predicated region
    $region22: #{tpu_custom_call.1} parent=1 // pred_check
      _
    $region23: #{tpu_custom_call.1} parent=1 // pred_check_branch
      %46 = sbr.rel (0) target = $region25
    $region24: #{tpu_custom_call.1} parent=1 // pred_region
      %47 = dma.done [#allocation3], 1024
    $region25: #{tpu_custom_call.1} parent=1 // pred_fallthru
      _
    // Predicated region
    $region26: #{tpu_custom_call.1} parent=1 // pred_check
      _
    $region27: #{tpu_custom_call.1} parent=1 // pred_check_branch
      %49 = sbr.rel (0) target = $region29
    $region28: #{tpu_custom_call.1} parent=1 // pred_region
      %50 = dma.done [#allocation6], 256
    $region29: #{tpu_custom_call.1} parent=1 // pred_fallthru
      _
    %v52 = vld [vmem:[#allocation2] sm:$0xf]
    %v53 = vld [vmem:[#allocation2 + $0x4] sm:$0xf]
    %v54 = vld [vmem:[#allocation2 + $0x8] sm:$0xf]
    %v55 = vld [vmem:[#allocation2 + $0xc] sm:$0xf]
    %v56 = vld [vmem:[#allocation2 + $0x10] sm:$0xf]
    %v57 = vld [vmem:[#allocation2 + $0x14] sm:$0xf]
    %v58 = vld [vmem:[#allocation2 + $0x18] sm:$0xf]
    %v59 = vld [vmem:[#allocation2 + $0x1c] sm:$0xf]
    %v60 = vld [vmem:[#allocation2 + $0x20] sm:$0xf]
    %v61 = vld [vmem:[#allocation2 + $0x24] sm:$0xf]
    %v62 = vld [vmem:[#allocation2 + $0x28] sm:$0xf]
    %v63 = vld [vmem:[#allocation2 + $0x2c] sm:$0xf]
    %v64 = vld [vmem:[#allocation2 + $0x30] sm:$0xf]
    %v65 = vld [vmem:[#allocation2 + $0x34] sm:$0xf]
    %v66 = vld [vmem:[#allocation2 + $0x38] sm:$0xf]
    %v67 = vld [vmem:[#allocation2 + $0x3c] sm:$0xf]
    %v68 = vld [vmem:[#allocation5] sm:$0xf]
    %v69 = vld [vmem:[#allocation5 + $0x4] sm:$0xf]
    %v70 = vld [vmem:[#allocation5 + $0x8] sm:$0xf]
    %v71 = vld [vmem:[#allocation5 + $0xc] sm:$0xf]
    %v72 = vld [vmem:[%s2] sm:$0x1]
    %v74 = vlaneseq
    %v75 = vshrl.u32 %v74, 7
    %v76 = vsub.s32 0, %v75
    %v77 = vrot.slane %v72, %v76
    %v95 = vunpack.c.l.b16 %v52
    %v96 = vunpack.c.l.b16 %v53
    %v97 = vunpack.c.l.b16 %v54
    %v98 = vunpack.c.l.b16 %v55
    %v99 = vunpack.c.l.b16 %v56
    %v100 = vunpack.c.l.b16 %v57
    %v101 = vunpack.c.l.b16 %v58
    %v102 = vunpack.c.l.b16 %v59
    %v103 = vunpack.c.l.b16 %v60
    %v104 = vunpack.c.l.b16 %v61
    %v105 = vunpack.c.l.b16 %v62
    %v106 = vunpack.c.l.b16 %v63
    %v107 = vunpack.c.l.b16 %v64
    %v108 = vunpack.c.l.b16 %v65
    %v109 = vunpack.c.l.b16 %v66
    %v110 = vunpack.c.l.b16 %v67
    %v111 = vpack.c.b16 %v96, %v95
    %v112 = vpack.c.b16 %v98, %v97
    %v113 = vpack.c.b16 %v100, %v99
    %v114 = vpack.c.b16 %v102, %v101
    %v115 = vpack.c.b16 %v104, %v103
    %v116 = vpack.c.b16 %v106, %v105
    %v117 = vpack.c.b16 %v108, %v107
    %v118 = vpack.c.b16 %v110, %v109
    %v123 = vunpack.c.l.b16 %v68
    %v124 = vunpack.c.l.b16 %v69
    %v125 = vunpack.c.l.b16 %v70
    %v126 = vunpack.c.l.b16 %v71
    %v127 = vpack.c.b16 %v124, %v123
    %v128 = vpack.c.b16 %v126, %v125
    %vm131 = vcmask 261120
    %v133 = vsel %vm131, %v111, 0
    %v136 = vsel %vm131, %v112, 0
    %v139 = vsel %vm131, %v113, 0
    %v142 = vsel %vm131, %v114, 0
    %v145 = vsel %vm131, %v115, 0
    %v148 = vsel %vm131, %v116, 0
    %v151 = vsel %vm131, %v117, 0
    %v154 = vsel %vm131, %v118, 0
    %156 = vmatprep.subr.bf16.mxu0 0
    %157 = vmatpush1.bf16.msra.mxu0 %v127
    %158 = vmatprep.subr.bf16.mxu0 0
    %159 = vmatpush1.bf16.msra.mxu0 %v128
    %160 = vmatprep.subr.bf16.mxu0 0
    %161 = vmatpush1.bf16.msra.mxu0 0
    %162 = vmatprep.subr.bf16.mxu0 0
    %163 = vmatpush1.bf16.msra.mxu0 0
    %164 = vmatprep.subr.bf16.mxu0 0
    %165 = vmatpush1.bf16.msra.mxu0 0
    %166 = vmatprep.subr.bf16.mxu0 0
    %167 = vmatpush1.bf16.msra.mxu0 0
    %168 = vmatprep.subr.bf16.mxu0 0
    %169 = vmatpush1.bf16.msra.mxu0 0
    %170 = vmatprep.subr.bf16.mxu0 0
    %171 = vmatpush1.bf16.msra.mxu0 0
    %172 = vmatprep.subr.bf16.mxu0 0
    %173 = vmatpush1.bf16.msra.mxu0 0
    %174 = vmatprep.subr.bf16.mxu0 0
    %175 = vmatpush1.bf16.msra.mxu0 0
    %176 = vmatprep.subr.bf16.mxu0 0
    %177 = vmatpush1.bf16.msra.mxu0 0
    %178 = vmatprep.subr.bf16.mxu0 0
    %179 = vmatpush1.bf16.msra.mxu0 0
    %180 = vmatprep.subr.bf16.mxu0 0
    %181 = vmatpush1.bf16.msra.mxu0 0
    %182 = vmatprep.subr.bf16.mxu0 0
    %183 = vmatpush1.bf16.msra.mxu0 0
    %184 = vmatprep.subr.bf16.mxu0 0
    %185 = vmatpush1.bf16.msra.mxu0 0
    %186 = vmatprep.subr.bf16.mxu0 0
    %187 = vmatpush1.bf16.msra.mxu0 0
    %188 = vmatprep.mubr.bf16.mxu0 0
    %189 = vmatmul.mubr.bf16.gmra.mrb[0].mxu0 %v133
    %v190 = vpop.f32.mrb[0].mxu0
    %v191 = vadd.f32 %v77, %v190
    %v192 = vpop.f32.mrb[0].mxu0
    %v193 = vpop.f32.mrb[0].mxu0
    %v194 = vadd.f32 %v77, %v193
    %v195 = vpop.f32.mrb[0].mxu0
    %196 = vmatprep.mubr.bf16.mxu0 0
    %197 = vmatmul.mubr.bf16.gmra.mrb[0].mxu0 %v136
    %v198 = vpop.f32.mrb[0].mxu0
    %v199 = vadd.f32 %v77, %v198
    %v200 = vpop.f32.mrb[0].mxu0
    %v201 = vpop.f32.mrb[0].mxu0
    %v202 = vadd.f32 %v77, %v201
    %v203 = vpop.f32.mrb[0].mxu0
    %204 = vmatprep.mubr.bf16.mxu0 0
    %205 = vmatmul.mubr.bf16.gmra.mrb[0].mxu0 %v139
    %v206 = vpop.f32.mrb[0].mxu0
    %v207 = vadd.f32 %v77, %v206
    %v208 = vpop.f32.mrb[0].mxu0
    %v209 = vpop.f32.mrb[0].mxu0
    %v210 = vadd.f32 %v77, %v209
    %v211 = vpop.f32.mrb[0].mxu0
    %212 = vmatprep.mubr.bf16.mxu0 0
    %213 = vmatmul.mubr.bf16.gmra.mrb[0].mxu0 %v142
    %v214 = vpop.f32.mrb[0].mxu0
    %v215 = vadd.f32 %v77, %v214
    %v216 = vpop.f32.mrb[0].mxu0
    %v217 = vpop.f32.mrb[0].mxu0
    %v218 = vadd.f32 %v77, %v217
    %v219 = vpop.f32.mrb[0].mxu0
    %220 = vmatprep.mubr.bf16.mxu0 0
    %221 = vmatmul.mubr.bf16.gmra.mrb[0].mxu0 %v145
    %v222 = vpop.f32.mrb[0].mxu0
    %v223 = vadd.f32 %v77, %v222
    %v224 = vpop.f32.mrb[0].mxu0
    %v225 = vpop.f32.mrb[0].mxu0
    %v226 = vadd.f32 %v77, %v225
    %v227 = vpop.f32.mrb[0].mxu0
    %228 = vmatprep.mubr.bf16.mxu0 0
    %229 = vmatmul.mubr.bf16.gmra.mrb[0].mxu0 %v148
    %v230 = vpop.f32.mrb[0].mxu0
    %v231 = vadd.f32 %v77, %v230
    %v232 = vpop.f32.mrb[0].mxu0
    %v233 = vpop.f32.mrb[0].mxu0
    %v234 = vadd.f32 %v77, %v233
    %v235 = vpop.f32.mrb[0].mxu0
    %236 = vmatprep.mubr.bf16.mxu0 0
    %237 = vmatmul.mubr.bf16.gmra.mrb[0].mxu0 %v151
    %v238 = vpop.f32.mrb[0].mxu0
    %v239 = vadd.f32 %v77, %v238
    %v240 = vpop.f32.mrb[0].mxu0
    %v241 = vpop.f32.mrb[0].mxu0
    %v242 = vadd.f32 %v77, %v241
    %v243 = vpop.f32.mrb[0].mxu0
    %244 = vmatprep.mubr.bf16.mxu0 0
    %245 = vmatmul.mubr.bf16.gmra.mrb[0].mxu0 %v154
    %v246 = vpop.f32.mrb[0].mxu0
    %v247 = vadd.f32 %v77, %v246
    %v248 = vpop.f32.mrb[0].mxu0
    %v249 = vpop.f32.mrb[0].mxu0
    %v250 = vadd.f32 %v77, %v249
    %v251 = vpop.f32.mrb[0].mxu0
    %252 = vdwg.mxu0
    %v253 = vmax.f32 %v191, 0.0
    %v254 = vmax.f32 %v194, 0.0
    %v255 = vmax.f32 %v199, 0.0
    %v256 = vmax.f32 %v202, 0.0
    %v257 = vmax.f32 %v207, 0.0
    %v258 = vmax.f32 %v210, 0.0
    %v259 = vmax.f32 %v215, 0.0
    %v260 = vmax.f32 %v218, 0.0
    %v261 = vmax.f32 %v223, 0.0
    %v262 = vmax.f32 %v226, 0.0
    %v263 = vmax.f32 %v231, 0.0
    %v264 = vmax.f32 %v234, 0.0
    %v265 = vmax.f32 %v239, 0.0
    %v266 = vmax.f32 %v242, 0.0
    %v267 = vmax.f32 %v247, 0.0
    %v268 = vmax.f32 %v250, 0.0
    %v269 = vld [vmem:[%s3] sm:$0x1]
    %v271 = vlaneseq
    %v272 = vshrl.u32 %v271, 7
    %v273 = vsub.s32 0, %v272
    %v274 = vrot.slane %v269, %v273
    %v276 = vmul.f32 %v253, %v274
    %v277 = vmul.f32 %v254, %v274
    %v278 = vmul.f32 %v255, %v274
    %v279 = vmul.f32 %v256, %v274
    %v280 = vmul.f32 %v257, %v274
    %v281 = vmul.f32 %v258, %v274
    %v282 = vmul.f32 %v259, %v274
    %v283 = vmul.f32 %v260, %v274
    %v284 = vmul.f32 %v261, %v274
    %v285 = vmul.f32 %v262, %v274
    %v286 = vmul.f32 %v263, %v274
    %v287 = vmul.f32 %v264, %v274
    %v288 = vmul.f32 %v265, %v274
    %v289 = vmul.f32 %v266, %v274
    %v290 = vmul.f32 %v267, %v274
    %v291 = vmul.f32 %v268, %v274
    %292 = vadd.xlane.f32.xlu0 %v276
    %v293 = vpop.xlane.xlu0 %292
    %294 = vadd.xlane.f32.xlu0 %v277
    %v295 = vpop.xlane.xlu0 %294
    %296 = vadd.xlane.f32.xlu0 %v278
    %v297 = vpop.xlane.xlu0 %296
    %298 = vadd.xlane.f32.xlu0 %v279
    %v299 = vpop.xlane.xlu0 %298
    %300 = vadd.xlane.f32.xlu0 %v280
    %v301 = vpop.xlane.xlu0 %300
    %302 = vadd.xlane.f32.xlu0 %v281
    %v303 = vpop.xlane.xlu0 %302
    %304 = vadd.xlane.f32.xlu0 %v282
    %v305 = vpop.xlane.xlu0 %304
    %306 = vadd.xlane.f32.xlu0 %v283
    %v307 = vpop.xlane.xlu0 %306
    %308 = vadd.xlane.f32.xlu0 %v284
    %v309 = vpop.xlane.xlu0 %308
    %310 = vadd.xlane.f32.xlu0 %v285
    %v311 = vpop.xlane.xlu0 %310
    %312 = vadd.xlane.f32.xlu0 %v286
    %v313 = vpop.xlane.xlu0 %312
    %314 = vadd.xlane.f32.xlu0 %v287
    %v315 = vpop.xlane.xlu0 %314
    %316 = vadd.xlane.f32.xlu0 %v288
    %v317 = vpop.xlane.xlu0 %316
    %318 = vadd.xlane.f32.xlu0 %v289
    %v319 = vpop.xlane.xlu0 %318
    %320 = vadd.xlane.f32.xlu0 %v290
    %v321 = vpop.xlane.xlu0 %320
    %322 = vadd.xlane.f32.xlu0 %v291
    %v323 = vpop.xlane.xlu0 %322
    %v324 = vld [vmem:[%s4] sm:$0x1]
    %v326 = vlaneseq
    %v327 = vshrl.u32 %v326, 7
    %v328 = vsub.s32 0, %v327
    %v329 = vrot.slane %v324, %v328
    %v331 = vmul.f32 %v253, %v329
    %v332 = vmul.f32 %v254, %v329
    %v333 = vmul.f32 %v255, %v329
    %v334 = vmul.f32 %v256, %v329
    %v335 = vmul.f32 %v257, %v329
    %v336 = vmul.f32 %v258, %v329
    %v337 = vmul.f32 %v259, %v329
    %v338 = vmul.f32 %v260, %v329
    %v339 = vmul.f32 %v261, %v329
    %v340 = vmul.f32 %v262, %v329
    %v341 = vmul.f32 %v263, %v329
    %v342 = vmul.f32 %v264, %v329
    %v343 = vmul.f32 %v265, %v329
    %v344 = vmul.f32 %v266, %v329
    %v345 = vmul.f32 %v267, %v329
    %v346 = vmul.f32 %v268, %v329
    %347 = vadd.xlane.f32.xlu0 %v331
    %v348 = vpop.xlane.xlu0 %347
    %349 = vadd.xlane.f32.xlu0 %v332
    %v350 = vpop.xlane.xlu0 %349
    %351 = vadd.xlane.f32.xlu0 %v333
    %v352 = vpop.xlane.xlu0 %351
    %353 = vadd.xlane.f32.xlu0 %v334
    %v354 = vpop.xlane.xlu0 %353
    %355 = vadd.xlane.f32.xlu0 %v335
    %v356 = vpop.xlane.xlu0 %355
    %357 = vadd.xlane.f32.xlu0 %v336
    %v358 = vpop.xlane.xlu0 %357
    %359 = vadd.xlane.f32.xlu0 %v337
    %v360 = vpop.xlane.xlu0 %359
    %361 = vadd.xlane.f32.xlu0 %v338
    %v362 = vpop.xlane.xlu0 %361
    %363 = vadd.xlane.f32.xlu0 %v339
    %v364 = vpop.xlane.xlu0 %363
    %365 = vadd.xlane.f32.xlu0 %v340
    %v366 = vpop.xlane.xlu0 %365
    %367 = vadd.xlane.f32.xlu0 %v341
    %v368 = vpop.xlane.xlu0 %367
    %369 = vadd.xlane.f32.xlu0 %v342
    %v370 = vpop.xlane.xlu0 %369
    %371 = vadd.xlane.f32.xlu0 %v343
    %v372 = vpop.xlane.xlu0 %371
    %373 = vadd.xlane.f32.xlu0 %v344
    %v374 = vpop.xlane.xlu0 %373
    %375 = vadd.xlane.f32.xlu0 %v345
    %v376 = vpop.xlane.xlu0 %375
    %377 = vadd.xlane.f32.xlu0 %v346
    %v378 = vpop.xlane.xlu0 %377
    %v379 = vlaneseq
    %v380 = vand.u32 %v379, 127
    %vm381 = vcmp.lt.s32.totalorder %v380, 12
    %v398 = vlaneseq
    %v399 = vshrl.u32 %v398, 7
    %v400 = vsub.s32 %v380, %v399
    %v401 = vrot.slane %v293, %v400
    %v402 = vadd.s32 %v380, 4294967288
    %v403 = vlaneseq
    %v404 = vshrl.u32 %v403, 7
    %v405 = vsub.s32 %v402, %v404
    %v406 = vrot.slane %v295, %v405
    %vm407 = vcmask 130112
    %v408 = vsel %vm407, %v406, %v401
    %v409 = vlaneseq
    %v410 = vshrl.u32 %v409, 7
    %v411 = vsub.s32 %v380, %v410
    %v412 = vrot.slane %v297, %v411
    %v413 = vlaneseq
    %v414 = vshrl.u32 %v413, 7
    %v415 = vsub.s32 %v402, %v414
    %v416 = vrot.slane %v299, %v415
    %v417 = vsel %vm407, %v416, %v412
    %v418 = vlaneseq
    %v419 = vshrl.u32 %v418, 7
    %v420 = vsub.s32 %v380, %v419
    %v421 = vrot.slane %v301, %v420
    %v422 = vlaneseq
    %v423 = vshrl.u32 %v422, 7
    %v424 = vsub.s32 %v402, %v423
    %v425 = vrot.slane %v303, %v424
    %v426 = vsel %vm407, %v425, %v421
    %v427 = vlaneseq
    %v428 = vshrl.u32 %v427, 7
    %v429 = vsub.s32 %v380, %v428
    %v430 = vrot.slane %v305, %v429
    %v431 = vlaneseq
    %v432 = vshrl.u32 %v431, 7
    %v433 = vsub.s32 %v402, %v432
    %v434 = vrot.slane %v307, %v433
    %v435 = vsel %vm407, %v434, %v430
    %v436 = vlaneseq
    %v437 = vshrl.u32 %v436, 7
    %v438 = vsub.s32 %v380, %v437
    %v439 = vrot.slane %v309, %v438
    %v440 = vlaneseq
    %v441 = vshrl.u32 %v440, 7
    %v442 = vsub.s32 %v402, %v441
    %v443 = vrot.slane %v311, %v442
    %v444 = vsel %vm407, %v443, %v439
    %v445 = vlaneseq
    %v446 = vshrl.u32 %v445, 7
    %v447 = vsub.s32 %v380, %v446
    %v448 = vrot.slane %v313, %v447
    %v449 = vlaneseq
    %v450 = vshrl.u32 %v449, 7
    %v451 = vsub.s32 %v402, %v450
    %v452 = vrot.slane %v315, %v451
    %v453 = vsel %vm407, %v452, %v448
    %v454 = vlaneseq
    %v455 = vshrl.u32 %v454, 7
    %v456 = vsub.s32 %v380, %v455
    %v457 = vrot.slane %v317, %v456
    %v458 = vlaneseq
    %v459 = vshrl.u32 %v458, 7
    %v460 = vsub.s32 %v402, %v459
    %v461 = vrot.slane %v319, %v460
    %v462 = vsel %vm407, %v461, %v457
    %v463 = vlaneseq
    %v464 = vshrl.u32 %v463, 7
    %v465 = vsub.s32 %v380, %v464
    %v466 = vrot.slane %v321, %v465
    %v467 = vlaneseq
    %v468 = vshrl.u32 %v467, 7
    %v469 = vsub.s32 %v402, %v468
    %v470 = vrot.slane %v323, %v469
    %v471 = vsel %vm407, %v470, %v466
    %vm472 = vcmask 1041409
    %v473 = vsel %vm472, %v417, %v408
    %vm474 = vcmask 1042434
    %v475 = vsel %vm474, %v426, %v473
    %vm476 = vcmask 1043459
    %v477 = vsel %vm476, %v435, %v475
    %vm478 = vcmask 1044484
    %v479 = vsel %vm478, %v444, %v477
    %vm480 = vcmask 1045509
    %v481 = vsel %vm480, %v453, %v479
    %vm482 = vcmask 1046534
    %v483 = vsel %vm482, %v462, %v481
    %vm484 = vcmask 1047559
    %v485 = vsel %vm484, %v471, %v483
    %v487 = vsel %vm381, %v485, -1e+30
    %vm488 = vcmask 130048
    %v489 = vsel %vm488, %v487, -inf
    %490 = vmax.xlane.f32.xlu0 %v489
    %v491 = vpop.xlane.xlu0 %490
    %v492 = vsub.f32 %v487, %v491
    %v493 = vmul.f32 %v492, 1.442695
    %v494 = vpow.pop %v493
    %v495 = vsel %vm488, %v494, 0.0
    %496 = vadd.xlane.f32.xlu0 %v495
    %v497 = vpop.xlane.xlu0 %496
    %v498 = vrcp.pop %v497
    %v499 = vmul.f32 %v494, %v498
    %500 = vst.msk [vmem:[#allocation7] sm:$0xff] %vm488, %v499
    %v517 = vlaneseq
    %v518 = vshrl.u32 %v517, 7
    %v519 = vsub.s32 %v380, %v518
    %v520 = vrot.slane %v348, %v519
    %v521 = vlaneseq
    %v522 = vshrl.u32 %v521, 7
    %v523 = vsub.s32 %v402, %v522
    %v524 = vrot.slane %v350, %v523
    %v525 = vsel %vm407, %v524, %v520
    %v526 = vlaneseq
    %v527 = vshrl.u32 %v526, 7
    %v528 = vsub.s32 %v380, %v527
    %v529 = vrot.slane %v352, %v528
    %v530 = vlaneseq
    %v531 = vshrl.u32 %v530, 7
    %v532 = vsub.s32 %v402, %v531
    %v533 = vrot.slane %v354, %v532
    %v534 = vsel %vm407, %v533, %v529
    %v535 = vlaneseq
    %v536 = vshrl.u32 %v535, 7
    %v537 = vsub.s32 %v380, %v536
    %v538 = vrot.slane %v356, %v537
    %v539 = vlaneseq
    %v540 = vshrl.u32 %v539, 7
    %v541 = vsub.s32 %v402, %v540
    %v542 = vrot.slane %v358, %v541
    %v543 = vsel %vm407, %v542, %v538
    %v544 = vlaneseq
    %v545 = vshrl.u32 %v544, 7
    %v546 = vsub.s32 %v380, %v545
    %v547 = vrot.slane %v360, %v546
    %v548 = vlaneseq
    %v549 = vshrl.u32 %v548, 7
    %v550 = vsub.s32 %v402, %v549
    %v551 = vrot.slane %v362, %v550
    %v552 = vsel %vm407, %v551, %v547
    %v553 = vlaneseq
    %v554 = vshrl.u32 %v553, 7
    %v555 = vsub.s32 %v380, %v554
    %v556 = vrot.slane %v364, %v555
    %v557 = vlaneseq
    %v558 = vshrl.u32 %v557, 7
    %v559 = vsub.s32 %v402, %v558
    %v560 = vrot.slane %v366, %v559
    %v561 = vsel %vm407, %v560, %v556
    %v562 = vlaneseq
    %v563 = vshrl.u32 %v562, 7
    %v564 = vsub.s32 %v380, %v563
    %v565 = vrot.slane %v368, %v564
    %v566 = vlaneseq
    %v567 = vshrl.u32 %v566, 7
    %v568 = vsub.s32 %v402, %v567
    %v569 = vrot.slane %v370, %v568
    %v570 = vsel %vm407, %v569, %v565
    %v571 = vlaneseq
    %v572 = vshrl.u32 %v571, 7
    %v573 = vsub.s32 %v380, %v572
    %v574 = vrot.slane %v372, %v573
    %v575 = vlaneseq
    %v576 = vshrl.u32 %v575, 7
    %v577 = vsub.s32 %v402, %v576
    %v578 = vrot.slane %v374, %v577
    %v579 = vsel %vm407, %v578, %v574
    %v580 = vlaneseq
    %v581 = vshrl.u32 %v580, 7
    %v582 = vsub.s32 %v380, %v581
    %v583 = vrot.slane %v376, %v582
    %v584 = vlaneseq
    %v585 = vshrl.u32 %v584, 7
    %v586 = vsub.s32 %v402, %v585
    %v587 = vrot.slane %v378, %v586
    %v588 = vsel %vm407, %v587, %v583
    %v589 = vsel %vm472, %v534, %v525
    %v590 = vsel %vm474, %v543, %v589
    %v591 = vsel %vm476, %v552, %v590
    %v592 = vsel %vm478, %v561, %v591
    %v593 = vsel %vm480, %v570, %v592
    %v594 = vsel %vm482, %v579, %v593
    %v595 = vsel %vm484, %v588, %v594
    %v597 = vmul.f32 %v499, %v595
    %v598 = vsel %vm488, %v597, 0.0
    %599 = vadd.xlane.f32.xlu0 %v598
    %v600 = vpop.xlane.xlu0 %599
    %vm601 = vcmask 7168
    %602 = vst.msk [vmem:[%s6] sm:$0xff] %vm601, %v600
    // Predicated region
    $region30: #{tpu_custom_call.1} parent=1 // pred_check
      _
    $region31: #{tpu_custom_call.1} parent=1 // pred_check_branch
      %604 = sbr.rel (0) target = $region33
    $region32: #{tpu_custom_call.1} parent=1 // pred_region
      %s606 = ssub.s32 128, 128
      %607 = vsyncadd [#allocation4], %s606
      %s609 = sshll.u32 [#allocation7], 4
      %s610 = int_to_ptr.vmem [resolvable:$true] %s609
      %612 = dma.vmem_to_hbm [thread:$0]  %s610, 128, %s5, [#allocation4]
    $region33: #{tpu_custom_call.1} parent=1 // pred_fallthru
      _
    // Predicated region
    $region34: #{tpu_custom_call.1} parent=1 // pred_check
      _
    $region35: #{tpu_custom_call.1} parent=1 // pred_check_branch
      %614 = sbr.rel (0) target = $region37
    $region36: #{tpu_custom_call.1} parent=1 // pred_region
      _
    $region37: #{tpu_custom_call.1} parent=1 // pred_fallthru
      _
    // Predicated region
    $region38: #{tpu_custom_call.1} parent=1 // pred_check
      _
    $region39: #{tpu_custom_call.1} parent=1 // pred_check_branch
      %616 = sbr.rel (0) target = $region41
    $region40: #{tpu_custom_call.1} parent=1 // pred_region
      %617 = dma.done [#allocation4], 128
    $region41: #{tpu_custom_call.1} parent=1 // pred_fallthru
      _
    // Predicated region
    $region42: #{tpu_custom_call.1} parent=1 // pred_check
      _
    $region43: #{tpu_custom_call.1} parent=1 // pred_check_branch
      %619 = sbr.rel (0) target = $region45
    $region44: #{tpu_custom_call.1} parent=1 // pred_region
      _
    $region45: #{tpu_custom_call.1} parent=1 // pred_fallthru
      _
    %620 = vsyncpa [#allocation3], 1
    %621 = vsyncpa [#allocation6], 1
    %622 = vsyncpa [#allocation4], 1

// kernel: tpu_custom_call.1
$region0: #{tpu_custom_call.1}
  #allocation0 [shape = 'u32[]', space=smem, size = 0x4, offset = 0x4, fixed_abs, tag = 'smem constant byte address 0x4 - core index']
  #allocation1 [shape = 'u32[144,128]{1,0:T(1,128)}', space=vmem, size = 0x12000, scoped, tag = 'internal scratch']
  %s0 = inlined_call_operand.hbm [shape: bf16[8,16,32], index: 0, kind: input, shape index: {}]
  %s1 = inlined_call_operand.hbm [shape: bf16[32,128], index: 1, kind: input, shape index: {}]
  %s2 = inlined_call_operand.vmem [shape: f32[1,128], index: 2, kind: input, shape index: {}]
  %s3 = inlined_call_operand.vmem [shape: f32[1,128], index: 3, kind: input, shape index: {}]
  %s4 = inlined_call_operand.vmem [shape: f32[1,128], index: 4, kind: input, shape index: {}]
  %s5 = inlined_call_operand.hbm [shape: f32[8,16], index: 5, kind: output, shape index: {0}]
  %s6 = inlined_call_operand.vmem [shape: f32[8,1], index: 6, kind: output, shape index: {1}]
  %7 = xla_tuple %s5, %s6
  %s8 = sld [smem:[#allocation0]]
  $region46: #{tpu_custom_call.1} parent=0
    _
  %s10 = ssub.s32 1, %s8
  %s11 = scalar_select 0, %s10, %s8
  $region1: #{tpu_custom_call.1} parent=0
    #allocation2 [shape = 'u8[32768]{0}', space=vmem, size = 0x8000, scoped, tag = 'input window, operand 0, single buffered']
    #allocation3 [shape = 's32[1]{0}', space=sflag, size = 0x4, scoped, tag = 'scoped memory for tpu_custom_call.1']
    #allocation4 [shape = 's32[1]{0}', space=sflag, size = 0x4, scoped, tag = 'scoped memory for tpu_custom_call.1']
    #allocation5 [shape = 'u8[8192]{0}', space=vmem, size = 0x2000, scoped, tag = 'input window, operand 1, single buffered']
    #allocation6 [shape = 's32[1]{0}', space=sflag, size = 0x4, scoped, tag = 'scoped memory for tpu_custom_call.1']
    #allocation7 [shape = 'u8[4096]{0}', space=vmem, size = 0x1000, scoped, tag = 'output window, operand 0, single buffered']
    %12 = vsyncpa [#allocation3], 0
    %13 = vsyncpa [#allocation6], 0
    %14 = vsyncpa [#allocation4], 0
    // Predicated region
    $region2: #{tpu_custom_call.1} parent=1 // pred_check
      _
    $region3: #{tpu_custom_call.1} parent=1 // pred_check_branch
      %16 = sbr.rel (0) target = $region5
    $region4: #{tpu_custom_call.1} parent=1 // pred_region
      %s18 = ssub.s32 1024, 1024
      %19 = vsyncadd [#allocation3], %s18
      %s20 = sshll.u32 [#allocation2], 4
      %s21 = int_to_ptr.vmem [resolvable:$true] %s20
      %26 = dma.hbm_to_vmem [thread:$0]  %s0, 1024, %s21, [#allocation3], 64, 64, 4
    $region5: #{tpu_custom_call.1} parent=1 // pred_fallthru
      _
    // Predicated region
    $region6: #{tpu_custom_call.1} parent=1 // pred_check
      _
    $region7: #{tpu_custom_call.1} parent=1 // pred_check_branch
      %28 = sbr.rel (0) target = $region9
    $region8: #{tpu_custom_call.1} parent=1 // pred_region
      %s30 = ssub.s32 256, 256
      %31 = vsyncadd [#allocation6], %s30
      %s32 = sshll.u32 [#allocation5], 4
      %s33 = int_to_ptr.vmem [resolvable:$true] %s32
      %38 = dma.hbm_to_vmem [thread:$0]  %s1, 256, %s33, [#allocation6], 64, 64, 4
    $region9: #{tpu_custom_call.1} parent=1 // pred_fallthru
      _
    // Predicated region
    $region10: #{tpu_custom_call.1} parent=1 // pred_check
      _
    $region11: #{tpu_custom_call.1} parent=1 // pred_check_branch
      %40 = sbr.rel (0) target = $region13
    $region12: #{tpu_custom_call.1} parent=1 // pred_region
      _
    $region13: #{tpu_custom_call.1} parent=1 // pred_fallthru
      _
    // Predicated region
    $region14: #{tpu_custom_call.1} parent=1 // pred_check
      _
    $region15: #{tpu_custom_call.1} parent=1 // pred_check_branch
      %42 = sbr.rel (0) target = $region17
    $region16: #{tpu_custom_call.1} parent=1 // pred_region
      _
    $region17: #{tpu_custom_call.1} parent=1 // pred_fallthru
      _
    // Predicated region
    $region18: #{tpu_custom_call.1} parent=1 // pred_check
      _
    $region19: #{tpu_custom_call.1} parent=1 // pred_check_branch
      %44 = sbr.rel (0) target = $region21
    $region20: #{tpu_custom_call.1} parent=1 // pred_region
      _
    $region21: #{tpu_custom_call.1} parent=1 // pred_fallthru
      _
    // Predicated region
    $region22: #{tpu_custom_call.1} parent=1 // pred_check
      _
    $region23: #{tpu_custom_call.1} parent=1 // pred_check_branch
      %46 = sbr.rel (0) target = $region25
    $region24: #{tpu_custom_call.1} parent=1 // pred_region
      %47 = dma.done [#allocation3], 1024
    $region25: #{tpu_custom_call.1} parent=1 // pred_fallthru
      _
    // Predicated region
    $region26: #{tpu_custom_call.1} parent=1 // pred_check
      _
    $region27: #{tpu_custom_call.1} parent=1 // pred_check_branch
      %49 = sbr.rel (0) target = $region29
    $region28: #{tpu_custom_call.1} parent=1 // pred_region
      %50 = dma.done [#allocation6], 256
    $region29: #{tpu_custom_call.1} parent=1 // pred_fallthru
      _
    %v52 = vld [vmem:[#allocation2] sm:$0xf]
    %v53 = vld [vmem:[#allocation2 + $0x4] sm:$0xf]
    %v54 = vld [vmem:[#allocation2 + $0x8] sm:$0xf]
    %v55 = vld [vmem:[#allocation2 + $0xc] sm:$0xf]
    %v56 = vld [vmem:[#allocation2 + $0x10] sm:$0xf]
    %v57 = vld [vmem:[#allocation2 + $0x14] sm:$0xf]
    %v58 = vld [vmem:[#allocation2 + $0x18] sm:$0xf]
    %v59 = vld [vmem:[#allocation2 + $0x1c] sm:$0xf]
    %v60 = vld [vmem:[#allocation2 + $0x20] sm:$0xf]
    %v61 = vld [vmem:[#allocation2 + $0x24] sm:$0xf]
    %v62 = vld [vmem:[#allocation2 + $0x28] sm:$0xf]
    %v63 = vld [vmem:[#allocation2 + $0x2c] sm:$0xf]
    %v64 = vld [vmem:[#allocation2 + $0x30] sm:$0xf]
    %v65 = vld [vmem:[#allocation2 + $0x34] sm:$0xf]
    %v66 = vld [vmem:[#allocation2 + $0x38] sm:$0xf]
    %v67 = vld [vmem:[#allocation2 + $0x3c] sm:$0xf]
    %v68 = vld [vmem:[#allocation5] sm:$0xf]
    %v69 = vld [vmem:[#allocation5 + $0x4] sm:$0xf]
    %v70 = vld [vmem:[#allocation5 + $0x8] sm:$0xf]
    %v71 = vld [vmem:[#allocation5 + $0xc] sm:$0xf]
    %v72 = vld [vmem:[%s2] sm:$0x1]
    %v74 = vlaneseq
    %v75 = vshrl.u32 %v74, 7
    %v76 = vsub.s32 0, %v75
    %v77 = vrot.slane %v72, %v76
    %v95 = vunpack.c.l.b16 %v52
    %v96 = vunpack.c.l.b16 %v53
    %v97 = vunpack.c.l.b16 %v54
    %v98 = vunpack.c.l.b16 %v55
    %v99 = vunpack.c.l.b16 %v56
    %v100 = vunpack.c.l.b16 %v57
    %v101 = vunpack.c.l.b16 %v58
    %v102 = vunpack.c.l.b16 %v59
    %v103 = vunpack.c.l.b16 %v60
    %v104 = vunpack.c.l.b16 %v61
    %v105 = vunpack.c.l.b16 %v62
    %v106 = vunpack.c.l.b16 %v63
    %v107 = vunpack.c.l.b16 %v64
    %v108 = vunpack.c.l.b16 %v65
    %v109 = vunpack.c.l.b16 %v66
    %v110 = vunpack.c.l.b16 %v67
    %v111 = vpack.c.b16 %v96, %v95
    %v112 = vpack.c.b16 %v98, %v97
    %v113 = vpack.c.b16 %v100, %v99
    %v114 = vpack.c.b16 %v102, %v101
    %v115 = vpack.c.b16 %v104, %v103
    %v116 = vpack.c.b16 %v106, %v105
    %v117 = vpack.c.b16 %v108, %v107
    %v118 = vpack.c.b16 %v110, %v109
    %v123 = vunpack.c.l.b16 %v68
    %v124 = vunpack.c.l.b16 %v69
    %v125 = vunpack.c.l.b16 %v70
    %v126 = vunpack.c.l.b16 %v71
    %v127 = vpack.c.b16 %v124, %v123
    %v128 = vpack.c.b16 %v126, %v125
    %vm131 = vcmask 261120
    %v133 = vsel %vm131, %v111, 0
    %v136 = vsel %vm131, %v112, 0
    %v139 = vsel %vm131, %v113, 0
    %v142 = vsel %vm131, %v114, 0
    %v145 = vsel %vm131, %v115, 0
    %v148 = vsel %vm131, %v116, 0
    %v151 = vsel %vm131, %v117, 0
    %v154 = vsel %vm131, %v118, 0
    %156 = vmatprep.subr.bf16.mxu0 0
    %157 = vmatpush1.bf16.msra.mxu0 %v127
    %158 = vmatprep.subr.bf16.mxu0 0
    %159 = vmatpush1.bf16.msra.mxu0 %v128
    %160 = vmatprep.subr.bf16.mxu0 0
    %161 = vmatpush1.bf16.msra.mxu0 0
    %162 = vmatprep.subr.bf16.mxu0 0
    %163 = vmatpush1.bf16.msra.mxu0 0
    %164 = vmatprep.subr.bf16.mxu0 0
    %165 = vmatpush1.bf16.msra.mxu0 0
    %166 = vmatprep.subr.bf16.mxu0 0
    %167 = vmatpush1.bf16.msra.mxu0 0
    %168 = vmatprep.subr.bf16.mxu0 0
    %169 = vmatpush1.bf16.msra.mxu0 0
    %170 = vmatprep.subr.bf16.mxu0 0
    %171 = vmatpush1.bf16.msra.mxu0 0
    %172 = vmatprep.subr.bf16.mxu0 0
    %173 = vmatpush1.bf16.msra.mxu0 0
    %174 = vmatprep.subr.bf16.mxu0 0
    %175 = vmatpush1.bf16.msra.mxu0 0
    %176 = vmatprep.subr.bf16.mxu0 0
    %177 = vmatpush1.bf16.msra.mxu0 0
    %178 = vmatprep.subr.bf16.mxu0 0
    %179 = vmatpush1.bf16.msra.mxu0 0
    %180 = vmatprep.subr.bf16.mxu0 0
    %181 = vmatpush1.bf16.msra.mxu0 0
    %182 = vmatprep.subr.bf16.mxu0 0
    %183 = vmatpush1.bf16.msra.mxu0 0
    %184 = vmatprep.subr.bf16.mxu0 0
    %185 = vmatpush1.bf16.msra.mxu0 0
    %186 = vmatprep.subr.bf16.mxu0 0
    %187 = vmatpush1.bf16.msra.mxu0 0
    %188 = vmatprep.mubr.bf16.mxu0 0
    %189 = vmatmul.mubr.bf16.gmra.mrb[0].mxu0 %v133
    %v190 = vpop.f32.mrb[0].mxu0
    %v191 = vadd.f32 %v77, %v190
    %v192 = vpop.f32.mrb[0].mxu0
    %v193 = vpop.f32.mrb[0].mxu0
    %v194 = vadd.f32 %v77, %v193
    %v195 = vpop.f32.mrb[0].mxu0
    %196 = vmatprep.mubr.bf16.mxu0 0
    %197 = vmatmul.mubr.bf16.gmra.mrb[0].mxu0 %v136
    %v198 = vpop.f32.mrb[0].mxu0
    %v199 = vadd.f32 %v77, %v198
    %v200 = vpop.f32.mrb[0].mxu0
    %v201 = vpop.f32.mrb[0].mxu0
    %v202 = vadd.f32 %v77, %v201
    %v203 = vpop.f32.mrb[0].mxu0
    %204 = vmatprep.mubr.bf16.mxu0 0
    %205 = vmatmul.mubr.bf16.gmra.mrb[0].mxu0 %v139
    %v206 = vpop.f32.mrb[0].mxu0
    %v207 = vadd.f32 %v77, %v206
    %v208 = vpop.f32.mrb[0].mxu0
    %v209 = vpop.f32.mrb[0].mxu0
    %v210 = vadd.f32 %v77, %v209
    %v211 = vpop.f32.mrb[0].mxu0
    %212 = vmatprep.mubr.bf16.mxu0 0
    %213 = vmatmul.mubr.bf16.gmra.mrb[0].mxu0 %v142
    %v214 = vpop.f32.mrb[0].mxu0
    %v215 = vadd.f32 %v77, %v214
    %v216 = vpop.f32.mrb[0].mxu0
    %v217 = vpop.f32.mrb[0].mxu0
    %v218 = vadd.f32 %v77, %v217
    %v219 = vpop.f32.mrb[0].mxu0
    %220 = vmatprep.mubr.bf16.mxu0 0
    %221 = vmatmul.mubr.bf16.gmra.mrb[0].mxu0 %v145
    %v222 = vpop.f32.mrb[0].mxu0
    %v223 = vadd.f32 %v77, %v222
    %v224 = vpop.f32.mrb[0].mxu0
    %v225 = vpop.f32.mrb[0].mxu0
    %v226 = vadd.f32 %v77, %v225
    %v227 = vpop.f32.mrb[0].mxu0
    %228 = vmatprep.mubr.bf16.mxu0 0
    %229 = vmatmul.mubr.bf16.gmra.mrb[0].mxu0 %v148
    %v230 = vpop.f32.mrb[0].mxu0
    %v231 = vadd.f32 %v77, %v230
    %v232 = vpop.f32.mrb[0].mxu0
    %v233 = vpop.f32.mrb[0].mxu0
    %v234 = vadd.f32 %v77, %v233
    %v235 = vpop.f32.mrb[0].mxu0
    %236 = vmatprep.mubr.bf16.mxu0 0
    %237 = vmatmul.mubr.bf16.gmra.mrb[0].mxu0 %v151
    %v238 = vpop.f32.mrb[0].mxu0
    %v239 = vadd.f32 %v77, %v238
    %v240 = vpop.f32.mrb[0].mxu0
    %v241 = vpop.f32.mrb[0].mxu0
    %v242 = vadd.f32 %v77, %v241
    %v243 = vpop.f32.mrb[0].mxu0
    %244 = vmatprep.mubr.bf16.mxu0 0
    %245 = vmatmul.mubr.bf16.gmra.mrb[0].mxu0 %v154
    %v246 = vpop.f32.mrb[0].mxu0
    %v247 = vadd.f32 %v77, %v246
    %v248 = vpop.f32.mrb[0].mxu0
    %v249 = vpop.f32.mrb[0].mxu0
    %v250 = vadd.f32 %v77, %v249
    %v251 = vpop.f32.mrb[0].mxu0
    %252 = vdwg.mxu0
    %v253 = vmax.f32 %v191, 0.0
    %v254 = vmax.f32 %v194, 0.0
    %v255 = vmax.f32 %v199, 0.0
    %v256 = vmax.f32 %v202, 0.0
    %v257 = vmax.f32 %v207, 0.0
    %v258 = vmax.f32 %v210, 0.0
    %v259 = vmax.f32 %v215, 0.0
    %v260 = vmax.f32 %v218, 0.0
    %v261 = vmax.f32 %v223, 0.0
    %v262 = vmax.f32 %v226, 0.0
    %v263 = vmax.f32 %v231, 0.0
    %v264 = vmax.f32 %v234, 0.0
    %v265 = vmax.f32 %v239, 0.0
    %v266 = vmax.f32 %v242, 0.0
    %v267 = vmax.f32 %v247, 0.0
    %v268 = vmax.f32 %v250, 0.0
    %v269 = vld [vmem:[%s3] sm:$0x1]
    %v271 = vlaneseq
    %v272 = vshrl.u32 %v271, 7
    %v273 = vsub.s32 0, %v272
    %v274 = vrot.slane %v269, %v273
    %v276 = vmul.f32 %v253, %v274
    %v277 = vmul.f32 %v254, %v274
    %v278 = vmul.f32 %v255, %v274
    %v279 = vmul.f32 %v256, %v274
    %v280 = vmul.f32 %v257, %v274
    %v281 = vmul.f32 %v258, %v274
    %v282 = vmul.f32 %v259, %v274
    %v283 = vmul.f32 %v260, %v274
    %v284 = vmul.f32 %v261, %v274
    %v285 = vmul.f32 %v262, %v274
    %v286 = vmul.f32 %v263, %v274
    %v287 = vmul.f32 %v264, %v274
    %v288 = vmul.f32 %v265, %v274
    %v289 = vmul.f32 %v266, %v274
    %v290 = vmul.f32 %v267, %v274
    %v291 = vmul.f32 %v268, %v274
    %292 = vadd.xlane.f32.xlu0 %v276
    %v293 = vpop.xlane.xlu0 %292
    %294 = vadd.xlane.f32.xlu0 %v277
    %v295 = vpop.xlane.xlu0 %294
    %296 = vadd.xlane.f32.xlu0 %v278
    %v297 = vpop.xlane.xlu0 %296
    %298 = vadd.xlane.f32.xlu0 %v279
    %v299 = vpop.xlane.xlu0 %298
    %300 = vadd.xlane.f32.xlu0 %v280
    %v301 = vpop.xlane.xlu0 %300
    %302 = vadd.xlane.f32.xlu0 %v281
    %v303 = vpop.xlane.xlu0 %302
    %304 = vadd.xlane.f32.xlu0 %v282
    %v305 = vpop.xlane.xlu0 %304
    %306 = vadd.xlane.f32.xlu0 %v283
    %v307 = vpop.xlane.xlu0 %306
    %308 = vadd.xlane.f32.xlu0 %v284
    %v309 = vpop.xlane.xlu0 %308
    %310 = vadd.xlane.f32.xlu0 %v285
    %v311 = vpop.xlane.xlu0 %310
    %312 = vadd.xlane.f32.xlu0 %v286
    %v313 = vpop.xlane.xlu0 %312
    %314 = vadd.xlane.f32.xlu0 %v287
    %v315 = vpop.xlane.xlu0 %314
    %316 = vadd.xlane.f32.xlu0 %v288
    %v317 = vpop.xlane.xlu0 %316
    %318 = vadd.xlane.f32.xlu0 %v289
    %v319 = vpop.xlane.xlu0 %318
    %320 = vadd.xlane.f32.xlu0 %v290
    %v321 = vpop.xlane.xlu0 %320
    %322 = vadd.xlane.f32.xlu0 %v291
    %v323 = vpop.xlane.xlu0 %322
    %v324 = vld [vmem:[%s4] sm:$0x1]
    %v326 = vlaneseq
    %v327 = vshrl.u32 %v326, 7
    %v328 = vsub.s32 0, %v327
    %v329 = vrot.slane %v324, %v328
    %v331 = vmul.f32 %v253, %v329
    %v332 = vmul.f32 %v254, %v329
    %v333 = vmul.f32 %v255, %v329
    %v334 = vmul.f32 %v256, %v329
    %v335 = vmul.f32 %v257, %v329
    %v336 = vmul.f32 %v258, %v329
    %v337 = vmul.f32 %v259, %v329
    %v338 = vmul.f32 %v260, %v329
    %v339 = vmul.f32 %v261, %v329
    %v340 = vmul.f32 %v262, %v329
    %v341 = vmul.f32 %v263, %v329
    %v342 = vmul.f32 %v264, %v329
    %v343 = vmul.f32 %v265, %v329
    %v344 = vmul.f32 %v266, %v329
    %v345 = vmul.f32 %v267, %v329
    %v346 = vmul.f32 %v268, %v329
    %347 = vadd.xlane.f32.xlu0 %v331
    %v348 = vpop.xlane.xlu0 %347
    %349 = vadd.xlane.f32.xlu0 %v332
    %v350 = vpop.xlane.xlu0 %349
    %351 = vadd.xlane.f32.xlu0 %v333
    %v352 = vpop.xlane.xlu0 %351
    %353 = vadd.xlane.f32.xlu0 %v334
    %v354 = vpop.xlane.xlu0 %353
    %355 = vadd.xlane.f32.xlu0 %v335
    %v356 = vpop.xlane.xlu0 %355
    %357 = vadd.xlane.f32.xlu0 %v336
    %v358 = vpop.xlane.xlu0 %357
    %359 = vadd.xlane.f32.xlu0 %v337
    %v360 = vpop.xlane.xlu0 %359
    %361 = vadd.xlane.f32.xlu0 %v338
    %v362 = vpop.xlane.xlu0 %361
    %363 = vadd.xlane.f32.xlu0 %v339
    %v364 = vpop.xlane.xlu0 %363
    %365 = vadd.xlane.f32.xlu0 %v340
    %v366 = vpop.xlane.xlu0 %365
    %367 = vadd.xlane.f32.xlu0 %v341
    %v368 = vpop.xlane.xlu0 %367
    %369 = vadd.xlane.f32.xlu0 %v342
    %v370 = vpop.xlane.xlu0 %369
    %371 = vadd.xlane.f32.xlu0 %v343
    %v372 = vpop.xlane.xlu0 %371
    %373 = vadd.xlane.f32.xlu0 %v344
    %v374 = vpop.xlane.xlu0 %373
    %375 = vadd.xlane.f32.xlu0 %v345
    %v376 = vpop.xlane.xlu0 %375
    %377 = vadd.xlane.f32.xlu0 %v346
    %v378 = vpop.xlane.xlu0 %377
    %v379 = vlaneseq
    %v380 = vand.u32 %v379, 127
    %vm381 = vcmp.lt.s32.totalorder %v380, 12
    %v398 = vlaneseq
    %v399 = vshrl.u32 %v398, 7
    %v400 = vsub.s32 %v380, %v399
    %v401 = vrot.slane %v293, %v400
    %v402 = vadd.s32 %v380, 4294967288
    %v403 = vlaneseq
    %v404 = vshrl.u32 %v403, 7
    %v405 = vsub.s32 %v402, %v404
    %v406 = vrot.slane %v295, %v405
    %vm407 = vcmask 130112
    %v408 = vsel %vm407, %v406, %v401
    %v409 = vlaneseq
    %v410 = vshrl.u32 %v409, 7
    %v411 = vsub.s32 %v380, %v410
    %v412 = vrot.slane %v297, %v411
    %v413 = vlaneseq
    %v414 = vshrl.u32 %v413, 7
    %v415 = vsub.s32 %v402, %v414
    %v416 = vrot.slane %v299, %v415
    %v417 = vsel %vm407, %v416, %v412
    %v418 = vlaneseq
    %v419 = vshrl.u32 %v418, 7
    %v420 = vsub.s32 %v380, %v419
    %v421 = vrot.slane %v301, %v420
    %v422 = vlaneseq
    %v423 = vshrl.u32 %v422, 7
    %v424 = vsub.s32 %v402, %v423
    %v425 = vrot.slane %v303, %v424
    %v426 = vsel %vm407, %v425, %v421
    %v427 = vlaneseq
    %v428 = vshrl.u32 %v427, 7
    %v429 = vsub.s32 %v380, %v428
    %v430 = vrot.slane %v305, %v429
    %v431 = vlaneseq
    %v432 = vshrl.u32 %v431, 7
    %v433 = vsub.s32 %v402, %v432
    %v434 = vrot.slane %v307, %v433
    %v435 = vsel %vm407, %v434, %v430
    %v436 = vlaneseq
    %v437 = vshrl.u32 %v436, 7
    %v438 = vsub.s32 %v380, %v437
    %v439 = vrot.slane %v309, %v438
    %v440 = vlaneseq
    %v441 = vshrl.u32 %v440, 7
    %v442 = vsub.s32 %v402, %v441
    %v443 = vrot.slane %v311, %v442
    %v444 = vsel %vm407, %v443, %v439
    %v445 = vlaneseq
    %v446 = vshrl.u32 %v445, 7
    %v447 = vsub.s32 %v380, %v446
    %v448 = vrot.slane %v313, %v447
    %v449 = vlaneseq
    %v450 = vshrl.u32 %v449, 7
    %v451 = vsub.s32 %v402, %v450
    %v452 = vrot.slane %v315, %v451
    %v453 = vsel %vm407, %v452, %v448
    %v454 = vlaneseq
    %v455 = vshrl.u32 %v454, 7
    %v456 = vsub.s32 %v380, %v455
    %v457 = vrot.slane %v317, %v456
    %v458 = vlaneseq
    %v459 = vshrl.u32 %v458, 7
    %v460 = vsub.s32 %v402, %v459
    %v461 = vrot.slane %v319, %v460
    %v462 = vsel %vm407, %v461, %v457
    %v463 = vlaneseq
    %v464 = vshrl.u32 %v463, 7
    %v465 = vsub.s32 %v380, %v464
    %v466 = vrot.slane %v321, %v465
    %v467 = vlaneseq
    %v468 = vshrl.u32 %v467, 7
    %v469 = vsub.s32 %v402, %v468
    %v470 = vrot.slane %v323, %v469
    %v471 = vsel %vm407, %v470, %v466
    %vm472 = vcmask 1041409
    %v473 = vsel %vm472, %v417, %v408
    %vm474 = vcmask 1042434
    %v475 = vsel %vm474, %v426, %v473
    %vm476 = vcmask 1043459
    %v477 = vsel %vm476, %v435, %v475
    %vm478 = vcmask 1044484
    %v479 = vsel %vm478, %v444, %v477
    %vm480 = vcmask 1045509
    %v481 = vsel %vm480, %v453, %v479
    %vm482 = vcmask 1046534
    %v483 = vsel %vm482, %v462, %v481
    %vm484 = vcmask 1047559
    %v485 = vsel %vm484, %v471, %v483
    %v487 = vsel %vm381, %v485, -1e+30
    %vm488 = vcmask 130048
    %v489 = vsel %vm488, %v487, -inf
    %490 = vmax.xlane.f32.xlu0 %v489
    %v491 = vpop.xlane.xlu0 %490
    %v492 = vsub.f32 %v487, %v491
    %v493 = vmul.f32 %v492, 1.442695
    %v494 = vpow.pop %v493
    %v495 = vsel %vm488, %v494, 0.0
    %496 = vadd.xlane.f32.xlu0 %v495
    %v497 = vpop.xlane.xlu0 %496
    %v498 = vrcp.pop %v497
    %v499 = vmul.f32 %v494, %v498
    %500 = vst.msk [vmem:[#allocation7] sm:$0xff] %vm488, %v499
    %v517 = vlaneseq
    %v518 = vshrl.u32 %v517, 7
    %v519 = vsub.s32 %v380, %v518
    %v520 = vrot.slane %v348, %v519
    %v521 = vlaneseq
    %v522 = vshrl.u32 %v521, 7
    %v523 = vsub.s32 %v402, %v522
    %v524 = vrot.slane %v350, %v523
    %v525 = vsel %vm407, %v524, %v520
    %v526 = vlaneseq
    %v527 = vshrl.u32 %v526, 7
    %v528 = vsub.s32 %v380, %v527
    %v529 = vrot.slane %v352, %v528
    %v530 = vlaneseq
    %v531 = vshrl.u32 %v530, 7
    %v532 = vsub.s32 %v402, %v531
    %v533 = vrot.slane %v354, %v532
    %v534 = vsel %vm407, %v533, %v529
    %v535 = vlaneseq
    %v536 = vshrl.u32 %v535, 7
    %v537 = vsub.s32 %v380, %v536
    %v538 = vrot.slane %v356, %v537
    %v539 = vlaneseq
    %v540 = vshrl.u32 %v539, 7
    %v541 = vsub.s32 %v402, %v540
    %v542 = vrot.slane %v358, %v541
    %v543 = vsel %vm407, %v542, %v538
    %v544 = vlaneseq
    %v545 = vshrl.u32 %v544, 7
    %v546 = vsub.s32 %v380, %v545
    %v547 = vrot.slane %v360, %v546
    %v548 = vlaneseq
    %v549 = vshrl.u32 %v548, 7
    %v550 = vsub.s32 %v402, %v549
    %v551 = vrot.slane %v362, %v550
    %v552 = vsel %vm407, %v551, %v547
    %v553 = vlaneseq
    %v554 = vshrl.u32 %v553, 7
    %v555 = vsub.s32 %v380, %v554
    %v556 = vrot.slane %v364, %v555
    %v557 = vlaneseq
    %v558 = vshrl.u32 %v557, 7
    %v559 = vsub.s32 %v402, %v558
    %v560 = vrot.slane %v366, %v559
    %v561 = vsel %vm407, %v560, %v556
    %v562 = vlaneseq
    %v563 = vshrl.u32 %v562, 7
    %v564 = vsub.s32 %v380, %v563
    %v565 = vrot.slane %v368, %v564
    %v566 = vlaneseq
    %v567 = vshrl.u32 %v566, 7
    %v568 = vsub.s32 %v402, %v567
    %v569 = vrot.slane %v370, %v568
    %v570 = vsel %vm407, %v569, %v565
    %v571 = vlaneseq
    %v572 = vshrl.u32 %v571, 7
    %v573 = vsub.s32 %v380, %v572
    %v574 = vrot.slane %v372, %v573
    %v575 = vlaneseq
    %v576 = vshrl.u32 %v575, 7
    %v577 = vsub.s32 %v402, %v576
    %v578 = vrot.slane %v374, %v577
    %v579 = vsel %vm407, %v578, %v574
    %v580 = vlaneseq
    %v581 = vshrl.u32 %v580, 7
    %v582 = vsub.s32 %v380, %v581
    %v583 = vrot.slane %v376, %v582
    %v584 = vlaneseq
    %v585 = vshrl.u32 %v584, 7
    %v586 = vsub.s32 %v402, %v585
    %v587 = vrot.slane %v378, %v586
    %v588 = vsel %vm407, %v587, %v583
    %v589 = vsel %vm472, %v534, %v525
    %v590 = vsel %vm474, %v543, %v589
    %v591 = vsel %vm476, %v552, %v590
    %v592 = vsel %vm478, %v561, %v591
    %v593 = vsel %vm480, %v570, %v592
    %v594 = vsel %vm482, %v579, %v593
    %v595 = vsel %vm484, %v588, %v594
    %v597 = vmul.f32 %v499, %v595
    %v598 = vsel %vm488, %v597, 0.0
    %599 = vadd.xlane.f32.xlu0 %v598
    %v600 = vpop.xlane.xlu0 %599
    %vm601 = vcmask 7168
    %602 = vst.msk [vmem:[%s6] sm:$0xff] %vm601, %v600
    // Predicated region
    $region30: #{tpu_custom_call.1} parent=1 // pred_check
      _
    $region31: #{tpu_custom_call.1} parent=1 // pred_check_branch
      %604 = sbr.rel (0) target = $region33
    $region32: #{tpu_custom_call.1} parent=1 // pred_region
      %s606 = ssub.s32 128, 128
      %607 = vsyncadd [#allocation4], %s606
      %s609 = sshll.u32 [#allocation7], 4
      %s610 = int_to_ptr.vmem [resolvable:$true] %s609
      %612 = dma.vmem_to_hbm [thread:$0]  %s610, 128, %s5, [#allocation4]
    $region33: #{tpu_custom_call.1} parent=1 // pred_fallthru
      _
    // Predicated region
    $region34: #{tpu_custom_call.1} parent=1 // pred_check
      _
    $region35: #{tpu_custom_call.1} parent=1 // pred_check_branch
      %614 = sbr.rel (0) target = $region37
    $region36: #{tpu_custom_call.1} parent=1 // pred_region
      _
    $region37: #{tpu_custom_call.1} parent=1 // pred_fallthru
      _
    // Predicated region
    $region38: #{tpu_custom_call.1} parent=1 // pred_check
      _
    $region39: #{tpu_custom_call.1} parent=1 // pred_check_branch
      %616 = sbr.rel (0) target = $region41
    $region40: #{tpu_custom_call.1} parent=1 // pred_region
      %617 = dma.done [#allocation4], 128
    $region41: #{tpu_custom_call.1} parent=1 // pred_fallthru
      _
    // Predicated region
    $region42: #{tpu_custom_call.1} parent=1 // pred_check
      _
    $region43: #{tpu_custom_call.1} parent=1 // pred_check_branch
      %619 = sbr.rel (0) target = $region45
    $region44: #{tpu_custom_call.1} parent=1 // pred_region
      _
    $region45: #{tpu_custom_call.1} parent=1 // pred_fallthru
      _
    %620 = vsyncpa [#allocation3], 1
    %621 = vsyncpa [#allocation6], 1
    %622 = vsyncpa [#allocation4], 1

</llo_original>
